<compile_context>
chip_gen: v5e
topology: v5e:2x2
jax: 0.10.0
libtpu: 0.0.40
codegen_flags: <defaults>
</compile_context>

<pallas_src>
import math
import jax
import jax.numpy as jnp
from jax.experimental import pallas as pl
from jax.experimental.pallas import tpu as pltpu


def bilinear_attention_kernel(x1_ref, x2_ref, w_ref, w1_ref, b1_ref,
                              w2_ref, b2_ref, out_ref, att_ref):
    TB, S, D2 = x2_ref.shape
    P = w1_ref.shape[1]

    x1 = x1_ref[...]                     # (TB, D1)
    x2 = x2_ref[...]                     # (TB, S, D2)

    # --- Bilinear: tanh((input_1 @ W)[:, None, :] * input_2), batched over TB ---
    x = jnp.dot(x1, w_ref[...], preferred_element_type=jnp.float32)    # (TB, D2)
    b_x = jnp.tanh(x[:, None, :] * x2)                                  # (TB, S, D2)

    # --- SelfAttention pre-pooling: one big (TB*S, D2) @ (D2, P) matmul ---
    h = jnp.tanh(
        jnp.dot(b_x.reshape(TB * S, D2), w1_ref[...],
                preferred_element_type=jnp.float32) + b1_ref[...])      # (TB*S, P)

    # --- pooling linear (output width 1): VPU multiply + lane reduce, no MXU ---
    hw = (h * w2_ref[...]).reshape(TB, S, P)
    logits = jnp.sum(hw, axis=-1) + b2_ref[0, 0]                        # (TB, S)

    # --- softmax over S (lane axis) ---
    m = jnp.max(logits, axis=-1, keepdims=True)
    e = jnp.exp(logits - m)
    att = e * pl.reciprocal(jnp.sum(e, axis=-1, keepdims=True),
                            approx=False)                               # (TB, S)

    # --- output = sum_s att[:, s] * (input_2 + b_x)[:, s, :] ---
    out = jnp.sum(att[:, :, None] * (x2 + b_x), axis=1)                 # (TB, D2)

    out_ref[...] = out.astype(out_ref.dtype)
    att_ref[...] = att.astype(att_ref.dtype)


def bilinear_attention(input_1, input_2, params, *, batch_tile=128):
    """input_1: (B, D1), input_2: (B, S, D2) -> (output (B, D2), att (B, S))."""
    W, W1, b1, W2, b2 = params
    B, D1 = input_1.shape
    _, S, D2 = input_2.shape
    P = W1.shape[1]

    # Batch tile: biggest that fits comfortably; pad B up to a multiple of TB.
    TB = min(batch_tile, B)
    n_blocks = pl.cdiv(B, TB)
    Bp = n_blocks * TB
    if Bp != B:
        input_1 = jnp.pad(input_1, ((0, Bp - B), (0, 0)))
        input_2 = jnp.pad(input_2, ((0, Bp - B), (0, 0), (0, 0)))

    w2_row = W2.reshape(1, P)                       # (P, 1) -> lane-dense (1, P) row
    b2_s = b2.reshape(1, 1).astype(jnp.float32)     # scalar bias, lives in SMEM

    out, att = pl.pallas_call(
        bilinear_attention_kernel,
        out_shape=(
            jax.ShapeDtypeStruct((Bp, D2), jnp.float32),
            jax.ShapeDtypeStruct((Bp, S), jnp.float32),
        ),
        grid_spec=pltpu.PrefetchScalarGridSpec(
            num_scalar_prefetch=0,
            grid=(n_blocks,),
            in_specs=[
                pl.BlockSpec((TB, D1), lambda b: (b, 0)),            # input_1 tile
                pl.BlockSpec((TB, S, D2), lambda b: (b, 0, 0)),      # input_2 tile
                pl.BlockSpec((D1, D2), lambda b: (0, 0)),            # bilinear W (resident)
                pl.BlockSpec((D2, P), lambda b: (0, 0)),             # pre_pooling_linear W
                pl.BlockSpec((1, P), lambda b: (0, 0)),              # pre_pooling_linear b
                pl.BlockSpec((1, P), lambda b: (0, 0)),              # pooling_linear W as row
                pl.BlockSpec(memory_space=pltpu.MemorySpace.SMEM),   # pooling_linear b (scalar)
            ],
            out_specs=[
                pl.BlockSpec((TB, D2), lambda b: (b, 0)),            # output tile
                pl.BlockSpec((TB, S), lambda b: (b, 0)),             # lane-dense att tile
            ],
        ),
        compiler_params=pltpu.CompilerParams(
            # Batch axis is embarrassingly parallel -> v7x's 2 TensorCores split it;
            # no-op on v5e/v6e.
            dimension_semantics=("parallel",)),
    )(input_1, input_2, W, W1, b1, w2_row, b2_s)

    return out[:B], att[:B]


def reference(input_1, input_2, params):
    W, W1, b1, W2, b2 = params
    x = input_1 @ W                              # (B, D2)
    b_x = jnp.tanh(x[:, None, :] * input_2)      # (B, S, D2)
    h = jnp.tanh(b_x @ W1 + b1[0])               # (B, S, P)
    logits = (h @ W2)[..., 0] + b2[0, 0]         # (B, S)
    att = jax.nn.softmax(logits, axis=-1)
    out = jnp.sum(input_2 * att[..., None], axis=1) + jnp.sum(b_x * att[..., None], axis=1)
    return out, att


if __name__ == "__main__":
    B, S = 2, 8
    D1, D2, P = 32, 32, 16   # input1_dim, input2_dim, config.pre_pooling_dim

    key = jax.random.PRNGKey(0)
    k1, k2, k3, k4, k5, k6, k7 = jax.random.split(key, 7)

    # Deterministic parameter init (matching the PyTorch init distributions).
    bound_w = 1.0 / math.sqrt(D2)
    W = jax.random.uniform(k1, (D1, D2), jnp.float32, -bound_w, bound_w)
    bound_1 = 1.0 / math.sqrt(D2)
    W1 = jax.random.uniform(k2, (D2, P), jnp.float32, -bound_1, bound_1)
    b1 = jax.random.uniform(k3, (1, P), jnp.float32, -bound_1, bound_1)
    bound_2 = 1.0 / math.sqrt(P)
    W2 = jax.random.uniform(k4, (P, 1), jnp.float32, -bound_2, bound_2)
    b2 = jax.random.uniform(k5, (1, 1), jnp.float32, -bound_2, bound_2)
    params = (W, W1, b1, W2, b2)

    input_1 = jax.random.normal(k6, (B, D1), jnp.float32)
    input_2 = jax.random.normal(k7, (B, S, D2), jnp.float32)

    out, att = bilinear_attention(input_1, input_2, params)
    out = jax.block_until_ready(out)
    att = jax.block_until_ready(att)

    out_ref, att_ref = reference(input_1, input_2, params)
    assert out.shape == (B, D2) and att.shape == (B, S)
    assert jnp.allclose(out, out_ref, atol=1e-5, rtol=1e-5)
    assert jnp.allclose(att, att_ref, atol=1e-5, rtol=1e-5)

    print("KERNEL_OK")
</pallas_src>

<mosaic_0001>
module attributes {stable_mosaic.version = 11 : i64} {
  func.func @bilinear_attention_kernel(%arg0: i32, %arg1: memref<2x32xf32, #tpu.memory_space<vmem>>, %arg2: memref<2x8x32xf32, #tpu.memory_space<vmem>>, %arg3: memref<32x32xf32, #tpu.memory_space<vmem>>, %arg4: memref<32x16xf32, #tpu.memory_space<vmem>>, %arg5: memref<1x16xf32, #tpu.memory_space<vmem>>, %arg6: memref<1x16xf32, #tpu.memory_space<vmem>>, %arg7: memref<1x1xf32, #tpu.memory_space<smem>>, %arg8: memref<2x32xf32, #tpu.memory_space<vmem>>, %arg9: memref<2x8xf32, #tpu.memory_space<vmem>>) attributes {dimension_semantics = [#tpu.dimension_semantics<parallel>], iteration_bounds = array<i64: 1>, scalar_prefetch = 0 : i64, scratch_operands = 0 : i64, tpu.core_type = #tpu.core_type<tc>, window_params = [{transform_indices = @transform_0, window_bounds = array<i64: 2, 32>}, {transform_indices = @transform_1, window_bounds = array<i64: 2, 8, 32>}, {pipeline_mode = #tpu.pipeline_mode<synchronous>, transform_indices = @transform_2, window_bounds = array<i64: 32, 32>}, {pipeline_mode = #tpu.pipeline_mode<synchronous>, transform_indices = @transform_3, window_bounds = array<i64: 32, 16>}, {pipeline_mode = #tpu.pipeline_mode<synchronous>, transform_indices = @transform_4, window_bounds = array<i64: 1, 16>}, {pipeline_mode = #tpu.pipeline_mode<synchronous>, transform_indices = @transform_5, window_bounds = array<i64: 1, 16>}, {transform_indices = @transform_6, window_bounds = array<i64: 1, 1>}, {transform_indices = @transform_7, window_bounds = array<i64: 2, 32>}, {transform_indices = @transform_8, window_bounds = array<i64: 2, 8>}]} {
    %c0 = arith.constant 0 : index
    %c0_0 = arith.constant 0 : index
    %0 = vector.load %arg1[%c0, %c0_0] : memref<2x32xf32, #tpu.memory_space<vmem>>, vector<2x32xf32>
    %c0_1 = arith.constant 0 : index
    %c0_2 = arith.constant 0 : index
    %c0_3 = arith.constant 0 : index
    %1 = vector.load %arg2[%c0_1, %c0_2, %c0_3] : memref<2x8x32xf32, #tpu.memory_space<vmem>>, vector<2x8x32xf32>
    %c0_4 = arith.constant 0 : index
    %c0_5 = arith.constant 0 : index
    %2 = vector.load %arg3[%c0_4, %c0_5] : memref<32x32xf32, #tpu.memory_space<vmem>>, vector<32x32xf32>
    %cst = arith.constant dense<0.000000e+00> : vector<2x32xf32>
    %3 = tpu.matmul %0, %2, %cst {dimension_numbers = #tpu.dot_dimension_numbers<[1], [0], [0], [1], [0, 0, 1, 1], [], []>} : vector<2x32xf32>, vector<32x32xf32>, vector<2x32xf32> -> vector<2x32xf32>
    %4 = vector.shape_cast %3 : vector<2x32xf32> to vector<2x1x32xf32>
    %5 = vector.broadcast %4 : vector<2x1x32xf32> to vector<2x8x32xf32>
    %6 = arith.mulf %5, %1 : vector<2x8x32xf32>
    %7 = math.tanh %6 : vector<2x8x32xf32>
    %8 = vector.shape_cast %7 : vector<2x8x32xf32> to vector<16x32xf32>
    %c0_6 = arith.constant 0 : index
    %c0_7 = arith.constant 0 : index
    %9 = vector.load %arg4[%c0_6, %c0_7] : memref<32x16xf32, #tpu.memory_space<vmem>>, vector<32x16xf32>
    %cst_8 = arith.constant dense<0.000000e+00> : vector<16x16xf32>
    %10 = tpu.matmul %8, %9, %cst_8 {dimension_numbers = #tpu.dot_dimension_numbers<[1], [0], [0], [1], [0, 0, 1, 1], [], []>} : vector<16x32xf32>, vector<32x16xf32>, vector<16x16xf32> -> vector<16x16xf32>
    %c0_9 = arith.constant 0 : index
    %c0_10 = arith.constant 0 : index
    %11 = vector.load %arg5[%c0_9, %c0_10] : memref<1x16xf32, #tpu.memory_space<vmem>>, vector<1x16xf32>
    %12 = vector.broadcast %11 : vector<1x16xf32> to vector<16x16xf32>
    %13 = arith.addf %10, %12 : vector<16x16xf32>
    %14 = math.tanh %13 : vector<16x16xf32>
    %c0_11 = arith.constant 0 : index
    %c0_12 = arith.constant 0 : index
    %15 = vector.load %arg6[%c0_11, %c0_12] : memref<1x16xf32, #tpu.memory_space<vmem>>, vector<1x16xf32>
    %16 = vector.broadcast %15 : vector<1x16xf32> to vector<16x16xf32>
    %17 = arith.mulf %14, %16 : vector<16x16xf32>
    %18 = vector.shape_cast %17 : vector<16x16xf32> to vector<2x8x16xf32>
    %cst_13 = arith.constant dense<0.000000e+00> : vector<2x8xf32>
    %19 = vector.multi_reduction <add>, %18, %cst_13 [2] : vector<2x8x16xf32> to vector<2x8xf32>
    %c0_14 = arith.constant 0 : index
    %c0_15 = arith.constant 0 : index
    %20 = memref.load %arg7[%c0_14, %c0_15] : memref<1x1xf32, #tpu.memory_space<smem>>
    %21 = vector.broadcast %20 : f32 to vector<2x8xf32>
    %22 = arith.addf %19, %21 : vector<2x8xf32>
    %cst_16 = arith.constant dense<0xFF800000> : vector<2xf32>
    %23 = vector.multi_reduction <maximumf>, %22, %cst_16 [1] : vector<2x8xf32> to vector<2xf32>
    %24 = vector.shape_cast %23 : vector<2xf32> to vector<2x1xf32>
    %25 = vector.broadcast %24 : vector<2x1xf32> to vector<2x8xf32>
    %26 = arith.subf %22, %25 : vector<2x8xf32>
    %27 = math.exp %26 : vector<2x8xf32>
    %cst_17 = arith.constant dense<0.000000e+00> : vector<2xf32>
    %28 = vector.multi_reduction <add>, %27, %cst_17 [1] : vector<2x8xf32> to vector<2xf32>
    %29 = vector.shape_cast %28 : vector<2xf32> to vector<2x1xf32>
    %30 = tpu.reciprocal %29 : vector<2x1xf32> -> vector<2x1xf32>
    %31 = vector.broadcast %30 : vector<2x1xf32> to vector<2x8xf32>
    %32 = arith.mulf %27, %31 : vector<2x8xf32>
    %33 = vector.shape_cast %32 : vector<2x8xf32> to vector<2x8x1xf32>
    %34 = arith.addf %1, %7 : vector<2x8x32xf32>
    %35 = vector.broadcast %33 : vector<2x8x1xf32> to vector<2x8x32xf32>
    %36 = arith.mulf %35, %34 : vector<2x8x32xf32>
    %cst_18 = arith.constant dense<0.000000e+00> : vector<2x32xf32>
    %37 = vector.multi_reduction <add>, %36, %cst_18 [1] : vector<2x8x32xf32> to vector<2x32xf32>
    %c0_19 = arith.constant 0 : index
    %c0_20 = arith.constant 0 : index
    %38 = vector.load %arg8[%c0_19, %c0_20] : memref<2x32xf32, #tpu.memory_space<vmem>>, vector<2x32xf32>
    tpu.vector_store %arg8[%c0_19, %c0_20], %37 {strides = array<i32>} : memref<2x32xf32, #tpu.memory_space<vmem>>, vector<2x32xf32>,
    %c0_21 = arith.constant 0 : index
    %c0_22 = arith.constant 0 : index
    %39 = vector.load %arg9[%c0_21, %c0_22] : memref<2x8xf32, #tpu.memory_space<vmem>>, vector<2x8xf32>
    tpu.vector_store %arg9[%c0_21, %c0_22], %32 {strides = array<i32>} : memref<2x8xf32, #tpu.memory_space<vmem>>, vector<2x8xf32>,
    return
  }
  func.func @transform_0(%arg0: i32) -> (i32, i32) {
    %c0_i32 = arith.constant 0 : i32
    %c0_i32_0 = arith.constant 0 : i32
    return %arg0, %c0_i32 : i32, i32
  }
  func.func @transform_1(%arg0: i32) -> (i32, i32, i32) {
    %c0_i32 = arith.constant 0 : i32
    %c0_i32_0 = arith.constant 0 : i32
    %c0_i32_1 = arith.constant 0 : i32
    return %arg0, %c0_i32, %c0_i32_0 : i32, i32, i32
  }
  func.func @transform_2(%arg0: i32) -> (i32, i32) {
    %c0_i32 = arith.constant 0 : i32
    %c0_i32_0 = arith.constant 0 : i32
    %c0_i32_1 = arith.constant 0 : i32
    return %c0_i32, %c0_i32_0 : i32, i32
  }
  func.func @transform_3(%arg0: i32) -> (i32, i32) {
    %c0_i32 = arith.constant 0 : i32
    %c0_i32_0 = arith.constant 0 : i32
    %c0_i32_1 = arith.constant 0 : i32
    return %c0_i32, %c0_i32_0 : i32, i32
  }
  func.func @transform_4(%arg0: i32) -> (i32, i32) {
    %c0_i32 = arith.constant 0 : i32
    %c0_i32_0 = arith.constant 0 : i32
    %c0_i32_1 = arith.constant 0 : i32
    return %c0_i32, %c0_i32_0 : i32, i32
  }
  func.func @transform_5(%arg0: i32) -> (i32, i32) {
    %c0_i32 = arith.constant 0 : i32
    %c0_i32_0 = arith.constant 0 : i32
    %c0_i32_1 = arith.constant 0 : i32
    return %c0_i32, %c0_i32_0 : i32, i32
  }
  func.func @transform_6(%arg0: i32) -> (i32, i32) {
    %c0_i32 = arith.constant 0 : i32
    %c0_i32_0 = arith.constant 0 : i32
    %c0_i32_1 = arith.constant 0 : i32
    return %c0_i32, %c0_i32_0 : i32, i32
  }
  func.func @transform_7(%arg0: i32) -> (i32, i32) {
    %c0_i32 = arith.constant 0 : i32
    %c0_i32_0 = arith.constant 0 : i32
    return %arg0, %c0_i32 : i32, i32
  }
  func.func @transform_8(%arg0: i32) -> (i32, i32) {
    %c0_i32 = arith.constant 0 : i32
    %c0_i32_0 = arith.constant 0 : i32
    return %arg0, %c0_i32 : i32, i32
  }
}

</mosaic_0001>

<llo_original>
// kernel: tpu_custom_call.1
$region0: #{tpu_custom_call.1}
  #allocation0 [shape = 'u32[]', space=smem, size = 0x4, offset = 0x4, fixed_abs, tag = 'smem constant byte address 0x4 - core index']
  #allocation1 [shape = 'u32[72,128]{1,0:T(1,128)}', space=vmem, size = 0x9000, scoped, tag = 'internal scratch']
  #allocation2 [shape = 'f32[1,1]{1,0:T(1,128)S(6)}', space=smem, size = 0x200, scoped, tag = 'scoped memory for tpu_custom_call.1']
  %s0 = inlined_call_operand.vmem [shape: f32[2,32], index: 0, kind: input, shape index: {}]
  %s1 = inlined_call_operand.vmem [shape: f32[2,8,32], index: 1, kind: input, shape index: {}]
  %s2 = inlined_call_operand.vmem [shape: f32[32,32], index: 2, kind: input, shape index: {}]
  %s3 = inlined_call_operand.vmem [shape: f32[32,16], index: 3, kind: input, shape index: {}]
  %s4 = inlined_call_operand.vmem [shape: f32[1,16], index: 4, kind: input, shape index: {}]
  %s5 = inlined_call_operand.vmem [shape: f32[1,16], index: 5, kind: input, shape index: {}]
  %s6 = inlined_call_operand.<no memory space> [shape: f32[1,1], index: 6, kind: input, shape index: {}]
  %s7 = inlined_call_operand.hbm [shape: f32[2,32], index: 7, kind: output, shape index: {0}]
  %s8 = inlined_call_operand.hbm [shape: f32[2,8], index: 8, kind: output, shape index: {1}]
  %9 = xla_tuple %s7, %s8
  %s10 = sld [smem:[#allocation0]]
  $region46: #{tpu_custom_call.1} parent=0
    _
  %s12 = ssub.s32 1, %s10
  %s13 = scalar_select 0, %s12, %s10
  %14 = sst [smem:[#allocation2]] %s6
  $region1: #{tpu_custom_call.1} parent=0
    #allocation3 [shape = 'u8[1024]{0}', space=vmem, size = 0x400, scoped, tag = 'output window, operand 0, single buffered']
    #allocation4 [shape = 's32[1]{0}', space=sflag, size = 0x4, scoped, tag = 'scoped memory for tpu_custom_call.1']
    #allocation5 [shape = 'u8[1024]{0}', space=vmem, size = 0x400, scoped, tag = 'output window, operand 1, single buffered']
    #allocation6 [shape = 's32[1]{0}', space=sflag, size = 0x4, scoped, tag = 'scoped memory for tpu_custom_call.1']
    %15 = vsyncpa [#allocation4], 0
    %16 = vsyncpa [#allocation6], 0
    // Predicated region
    $region2: #{tpu_custom_call.1} parent=1 // pred_check
      _
    $region3: #{tpu_custom_call.1} parent=1 // pred_check_branch
      %18 = sbr.rel (0) target = $region5
    $region4: #{tpu_custom_call.1} parent=1 // pred_region
      _
    $region5: #{tpu_custom_call.1} parent=1 // pred_fallthru
      _
    // Predicated region
    $region6: #{tpu_custom_call.1} parent=1 // pred_check
      _
    $region7: #{tpu_custom_call.1} parent=1 // pred_check_branch
      %20 = sbr.rel (0) target = $region9
    $region8: #{tpu_custom_call.1} parent=1 // pred_region
      _
    $region9: #{tpu_custom_call.1} parent=1 // pred_fallthru
      _
    // Predicated region
    $region10: #{tpu_custom_call.1} parent=1 // pred_check
      _
    $region11: #{tpu_custom_call.1} parent=1 // pred_check_branch
      %22 = sbr.rel (0) target = $region13
    $region12: #{tpu_custom_call.1} parent=1 // pred_region
      _
    $region13: #{tpu_custom_call.1} parent=1 // pred_fallthru
      _
    // Predicated region
    $region14: #{tpu_custom_call.1} parent=1 // pred_check
      _
    $region15: #{tpu_custom_call.1} parent=1 // pred_check_branch
      %24 = sbr.rel (0) target = $region17
    $region16: #{tpu_custom_call.1} parent=1 // pred_region
      _
    $region17: #{tpu_custom_call.1} parent=1 // pred_fallthru
      _
    // Predicated region
    $region18: #{tpu_custom_call.1} parent=1 // pred_check
      _
    $region19: #{tpu_custom_call.1} parent=1 // pred_check_branch
      %26 = sbr.rel (0) target = $region21
    $region20: #{tpu_custom_call.1} parent=1 // pred_region
      _
    $region21: #{tpu_custom_call.1} parent=1 // pred_fallthru
      _
    // Predicated region
    $region22: #{tpu_custom_call.1} parent=1 // pred_check
      _
    $region23: #{tpu_custom_call.1} parent=1 // pred_check_branch
      %28 = sbr.rel (0) target = $region25
    $region24: #{tpu_custom_call.1} parent=1 // pred_region
      _
    $region25: #{tpu_custom_call.1} parent=1 // pred_fallthru
      _
    // Predicated region
    $region26: #{tpu_custom_call.1} parent=1 // pred_check
      _
    $region27: #{tpu_custom_call.1} parent=1 // pred_check_branch
      %30 = sbr.rel (0) target = $region29
    $region28: #{tpu_custom_call.1} parent=1 // pred_region
      _
    $region29: #{tpu_custom_call.1} parent=1 // pred_fallthru
      _
    %v31 = vld [vmem:[%s0] sm:$0x3]
    %v32 = vld [vmem:[%s1] sm:$0xff]
    %v33 = vld [vmem:[%s1 + $0x8] sm:$0xff]
    %v34 = vld [vmem:[%s2] sm:$0xff]
    %v35 = vld [vmem:[%s2 + $0x8] sm:$0xff]
    %v36 = vld [vmem:[%s2 + $0x10] sm:$0xff]
    %v37 = vld [vmem:[%s2 + $0x18] sm:$0xff]
    %vm38 = vcmask 261120
    %v40 = vsel %vm38, %v31, 0
    %42 = vmatpush.msra.mxu0 0.0
    %43 = vmatpush.msra.mxu0 0.0
    %44 = vmatpush.msra.mxu0 0.0
    %45 = vmatpush.msra.mxu0 0.0
    %46 = vmatpush.msra.mxu0 0.0
    %47 = vmatpush.msra.mxu0 0.0
    %48 = vmatpush.msra.mxu0 0.0
    %49 = vmatpush.msra.mxu0 0.0
    %50 = vmatpush.msra.mxu0 0.0
    %51 = vmatpush.msra.mxu0 0.0
    %52 = vmatpush.msra.mxu0 0.0
    %53 = vmatpush.msra.mxu0 0.0
    %54 = vmatpush.msra.mxu0 %v37
    %55 = vmatpush.msra.mxu0 %v36
    %56 = vmatpush.msra.mxu0 %v35
    %57 = vmatpush.msra.mxu0 %v34
    %58 = vmatmul.f32.gmra.mxu0 %v40
    %v59 = vpop.f32.mrf.mxu0
    %v60 = vadd.f32 0.0, %v59
    %61 = vdwg.mxu0
    %v63 = vrot.slane %v60, 1
    %v64 = vperm.slane %v60, 0
    %v65 = vperm.slane %v63, 0
    %v68 = vmul.f32 %v64, %v32
    %v69 = vmul.f32 %v65, %v33
    %v70 = vtanh.pop %v68
    %v71 = vtanh.pop %v69
    %v72 = vld [vmem:[%s3] sm:$0xff]
    %v73 = vld [vmem:[%s3 + $0x8] sm:$0xff]
    %v74 = vld [vmem:[%s3 + $0x10] sm:$0xff]
    %v75 = vld [vmem:[%s3 + $0x18] sm:$0xff]
    %v76 = vld [vmem:[%s4] sm:$0x1]
    %v78 = vperm.slane %v76, 0
    %v81 = vsel %vm38, %v70, 0
    %v84 = vsel %vm38, %v71, 0
    %86 = vmatpush.msra.mxu0 0.0
    %87 = vmatpush.msra.mxu0 0.0
    %88 = vmatpush.msra.mxu0 0.0
    %89 = vmatpush.msra.mxu0 0.0
    %90 = vmatpush.msra.mxu0 0.0
    %91 = vmatpush.msra.mxu0 0.0
    %92 = vmatpush.msra.mxu0 0.0
    %93 = vmatpush.msra.mxu0 0.0
    %94 = vmatpush.msra.mxu0 0.0
    %95 = vmatpush.msra.mxu0 0.0
    %96 = vmatpush.msra.mxu0 0.0
    %97 = vmatpush.msra.mxu0 0.0
    %98 = vmatpush.msra.mxu0 %v75
    %99 = vmatpush.msra.mxu0 %v74
    %100 = vmatpush.msra.mxu0 %v73
    %101 = vmatpush.msra.mxu0 %v72
    %102 = vmatmul.f32.gmra.mxu0 %v81
    %v103 = vpop.f32.mrf.mxu0
    %v104 = vadd.f32 %v78, %v103
    %105 = vmatmul.f32.gmra.mxu0 %v84
    %v106 = vpop.f32.mrf.mxu0
    %v107 = vadd.f32 %v78, %v106
    %108 = vdwg.mxu0
    %v109 = vtanh.pop %v104
    %v110 = vtanh.pop %v107
    %v111 = vld [vmem:[%s5] sm:$0x1]
    %v113 = vperm.slane %v111, 0
    %v115 = vmul.f32 %v109, %v113
    %v116 = vmul.f32 %v110, %v113
    %vm117 = vcmask 130048
    %v118 = vsel %vm117, %v115, 0.0
    %119 = vadd.xlane.f32.xlu0 %v118
    %v120 = vpop.xlane.xlu0 %119
    %v121 = vsel %vm117, %v116, 0.0
    %122 = vadd.xlane.f32.xlu0 %v121
    %v123 = vpop.xlane.xlu0 %122
    %s124 = sld [smem:[#allocation2]]
    %v125 = vstv %s124
    %v126 = vadd.f32 %v120, %v125
    %v127 = vadd.f32 %v123, %v125
    %v130 = vlaneseq
    %v131 = vand.u32 %v130, 127
    %v132 = vperm.slane %v126, %v131
    %v133 = vperm.slane %v127, %v131
    %vm134 = vcmask 1041409
    %v135 = vsel %vm134, %v133, %v132
    %vm137 = vcmask 58368
    %v138 = vsel %vm137, %v135, -inf
    %139 = vmax.xlane.f32.xlu0 %v138
    %v140 = vpop.xlane.xlu0 %139
    %v142 = vperm.slane %v140, 0
    %v143 = vperm.slane %v140, 1
    %v146 = vsub.f32 %v126, %v142
    %v147 = vsub.f32 %v127, %v143
    %v148 = vmul.f32 %v146, 1.442695
    %v149 = vpow.pop %v148
    %v150 = vmul.f32 %v147, 1.442695
    %v151 = vpow.pop %v150
    %154 = vset.pattern.permute.xlu0 0
    %155 = vperm.xlu0 %154, %v149
    %v156 = vpop.permute.xlu0 %155
    %157 = vset.pattern.permute.xlu0 0
    %158 = vperm.xlu0 %157, %v151
    %v159 = vpop.permute.xlu0 %158
    %v160 = vperm.slane %v156, %v131
    %v161 = vperm.slane %v159, %v131
    %v162 = vsel %vm134, %v161, %v160
    %v164 = vsel %vm137, %v162, 0.0
    %165 = vadd.xlane.f32.xlu0 %v164
    %v166 = vpop.xlane.xlu0 %165
    %v167 = vrcp.pop %v166
    %v168 = vmul.f32 %v166, %v167
    %v169 = vsub.f32 1.0, %v168
    %v170 = vmul.f32 %v167, %v169
    %v171 = vadd.f32 %v167, %v170
    %vm172 = vweird.f32 %v166
    %vm173 = vweird.f32 %v167
    %vm174 = vmor %vm172, %vm173
    %v175 = vsel %vm174, %v167, %v171
    %v176 = vand.u32 2147483647, %v166
    %vm177 = vcmp.eq.f32.partialorder %v176, 8.507059e+37
    %v178 = vand.u32 %v166, 2147483648
    %v179 = vor.u32 1.1754944e-38, %v178
    %v180 = vsel %vm177, %v179, %v175
    %v182 = vperm.slane %v180, 0
    %v183 = vperm.slane %v180, 1
    %v186 = vmul.f32 %v149, %v182
    %v187 = vmul.f32 %v151, %v183
    %v188 = vadd.f32 %v32, %v70
    %v189 = vadd.f32 %v33, %v71
    %191 = vset.pattern.permute.xlu0 0
    %192 = vperm.xlu0 %191, %v186
    %v193 = vpop.permute.xlu0 %192
    %196 = vset.pattern.permute.xlu0 0
    %197 = vperm.xlu0 %196, %v187
    %v198 = vpop.permute.xlu0 %197
    %v200 = vmul.f32 %v193, %v188
    %v201 = vmul.f32 %v198, %v189
    %v202 = vsel %vm38, %v200, 0.0
    %v203 = vrot.slane %v202, 4
    %v204 = vadd.f32 %v202, %v203
    %v205 = vrot.slane %v204, 2
    %v206 = vadd.f32 %v204, %v205
    %v207 = vrot.slane %v206, 1
    %v208 = vadd.f32 %v206, %v207
    %v209 = vsel %vm38, %v201, 0.0
    %v210 = vrot.slane %v209, 4
    %v211 = vadd.f32 %v209, %v210
    %v212 = vrot.slane %v211, 2
    %v213 = vadd.f32 %v211, %v212
    %v214 = vrot.slane %v213, 1
    %v215 = vadd.f32 %v213, %v214
    %v218 = vsel %vm134, %v215, %v208
    %vm220 = vcmask 254976
    %221 = vst.msk [vmem:[#allocation3] sm:$0x3] %vm220, %v218
    %v222 = vperm.slane %v193, %v131
    %v223 = vperm.slane %v198, %v131
    %v224 = vsel %vm134, %v223, %v222
    %226 = vst.msk [vmem:[#allocation5] sm:$0x3] %vm137, %v224
    // Predicated region
    $region30: #{tpu_custom_call.1} parent=1 // pred_check
      _
    $region31: #{tpu_custom_call.1} parent=1 // pred_check_branch
      %228 = sbr.rel (0) target = $region33
    $region32: #{tpu_custom_call.1} parent=1 // pred_region
      %230 = vsyncadd [#allocation4], 0
      %s232 = sshll.u32 [#allocation3], 4
      %s233 = int_to_ptr.vmem [resolvable:$true] %s232
      %s234 = sshll.u32 %s7, 4
      %s235 = int_to_ptr.hbm [resolvable:$true] %s234
      %237 = dma.vmem_to_hbm [thread:$0]  %s233, 32, %s235, [#allocation4]
    $region33: #{tpu_custom_call.1} parent=1 // pred_fallthru
      _
    // Predicated region
    $region34: #{tpu_custom_call.1} parent=1 // pred_check
      _
    $region35: #{tpu_custom_call.1} parent=1 // pred_check_branch
      %239 = sbr.rel (0) target = $region37
    $region36: #{tpu_custom_call.1} parent=1 // pred_region
      %241 = vsyncadd [#allocation6], 0
      %s243 = sshll.u32 [#allocation5], 4
      %s244 = int_to_ptr.vmem [resolvable:$true] %s243
      %s245 = sshll.u32 %s8, 4
      %s246 = int_to_ptr.hbm [resolvable:$true] %s245
      %248 = dma.vmem_to_hbm [thread:$0]  %s244, 32, %s246, [#allocation6]
    $region37: #{tpu_custom_call.1} parent=1 // pred_fallthru
      _
    // Predicated region
    $region38: #{tpu_custom_call.1} parent=1 // pred_check
      _
    $region39: #{tpu_custom_call.1} parent=1 // pred_check_branch
      %250 = sbr.rel (0) target = $region41
    $region40: #{tpu_custom_call.1} parent=1 // pred_region
      %252 = dma.done [#allocation4], 32
    $region41: #{tpu_custom_call.1} parent=1 // pred_fallthru
      _
    // Predicated region
    $region42: #{tpu_custom_call.1} parent=1 // pred_check
      _
    $region43: #{tpu_custom_call.1} parent=1 // pred_check_branch
      %254 = sbr.rel (0) target = $region45
    $region44: #{tpu_custom_call.1} parent=1 // pred_region
      %256 = dma.done [#allocation6], 32
    $region45: #{tpu_custom_call.1} parent=1 // pred_fallthru
      _
    %257 = vsyncpa [#allocation4], 1
    %258 = vsyncpa [#allocation6], 1

</llo_original>
